<compile_context>
chip_gen: v5e
topology: v5e:2x2
jax: 0.10.0
libtpu: 0.0.40
codegen_flags: <defaults>
</compile_context>

<pallas_src>
import jax
import jax.numpy as jnp
from jax.experimental import pallas as pl
from jax.experimental.pallas import tpu as pltpu


def _round_up(n, m):
    return ((n + m - 1) // m) * m


def ctoy_kernel(x_ref, w1_ref, b1_ref, w2_ref, b2_ref, gt_ref, gsq_ref,
                alpha_ref, out_ref, h_ref, hsq_ref):
    # Grid = (B tiles [parallel], C tiles [arbitrary, inner]).
    # x:  (tB, Dp)   w1: (Dp, Hp)  b1: (1, Hp)   w2: (Hp, Ep)  b2: (1, Ep)
    # gT: (Ep, tC) holding -2*g^T  gsq: (1, tC)  alpha: (1,1) SMEM
    # out: (tB, tC)  scratch: h (tB, Ep) compute dtype, hsq (tB, 1) f32

    # FC + ||h||^2 only on the first C step of each B tile; cached in scratch.
    @pl.when(pl.program_id(1) == 0)
    def _():
        z1 = jnp.dot(x_ref[...], w1_ref[...],
                     preferred_element_type=jnp.float32) + b1_ref[...]
        a1 = jax.nn.sigmoid(z1)                                   # f32, EUP/VPU
        h = jnp.dot(a1.astype(w2_ref.dtype), w2_ref[...],
                    preferred_element_type=jnp.float32) + b2_ref[...]   # (tB,Ep) f32
        hsq_ref[...] = jnp.sum(h * h, axis=-1, keepdims=True)     # (tB, 1) f32
        h_ref[...] = h.astype(h_ref.dtype)                        # cast once, not per C tile

    # Pairwise squared L2 via Gram decomposition (MXU); the -2 factor is
    # already folded into gT, so the epilogue is a pure add + max + sqrt.
    hg = jnp.dot(h_ref[...], gt_ref[...],
                 preferred_element_type=jnp.float32)              # (tB, tC)
    sq = jnp.maximum(hsq_ref[...] + gsq_ref[...] + hg, 0.0)
    # Fold the output negation into a single scalar multiply.
    out_ref[...] = (-alpha_ref[0, 0]) * jnp.sqrt(sq)


def ctoy_prepare(w1, b1, w2, b2, emb_weight, alpha, *, compute_dtype=jnp.bfloat16):
    """One-time weight preprocessing (hoisted out of the per-call hot path).

    Pads / casts FC weights, pre-transposes the class table as -2*g^T, and
    precomputes ||g||^2.  compute_dtype=bfloat16 (default) feeds the MXU at
    full rate on v5e/v6e/v7x with f32 accumulation; use float32 when exact
    near-zero distances matter (Gram-trick cancellation).
    """
    D, H = w1.shape
    H2, E = w2.shape
    C, E2 = emb_weight.shape
    assert H == H2 and E == E2

    cd = jnp.dtype(compute_dtype)
    bf16 = cd == jnp.dtype(jnp.bfloat16)
    cmul = 256 if bf16 else 128                 # contraction-dim multiple (MXU width)
    Dp, Hp, Ep = _round_up(D, cmul), _round_up(H, cmul), _round_up(E, cmul)
    Cp = _round_up(C, 128)
    tC = min(Cp, 512)
    Cp = _round_up(Cp, tC)

    f32 = jnp.float32
    w1p = jnp.zeros((Dp, Hp), cd).at[:D, :H].set(w1.astype(cd))
    b1p = jnp.zeros((1, Hp), f32).at[0, :H].set(b1.astype(f32))
    w2p = jnp.zeros((Hp, Ep), cd).at[:H, :E].set(w2.astype(cd))
    b2p = jnp.zeros((1, Ep), f32).at[0, :E].set(b2.astype(f32))

    g = emb_weight.astype(f32)
    # Embedding table pre-transposed, padded and pre-scaled by -2 (exact power
    # of two) -> in-kernel epilogue is sq = hsq + gsq + h@gT.
    gtp = jnp.zeros((Ep, Cp), cd).at[:E, :C].set((-2.0 * g.T).astype(cd))
    # ||g||^2 per class, computed once in f32 (shared by every B tile).
    gsq = jnp.zeros((1, Cp), f32).at[0, :C].set(jnp.sum(g * g, axis=-1))
    alpha2 = jnp.reshape(alpha.astype(f32), (1, 1))

    return dict(w1p=w1p, b1p=b1p, w2p=w2p, b2p=b2p, gtp=gtp, gsq=gsq,
                alpha=alpha2, dims=(D, H, E, C, Dp, Hp, Ep, Cp, tC),
                compute_dtype=cd)


def ctoy_embedding_forward(x, params):
    """x: (B, D_in) f32.  params: output of ctoy_prepare.  Returns (B, C) f32."""
    D, H, E, C, Dp, Hp, Ep, Cp, tC = params["dims"]
    cd = params["compute_dtype"]
    B = x.shape[0]
    assert x.shape[1] == D

    bf16 = cd == jnp.dtype(jnp.bfloat16)
    sub = 16 if bf16 else 8                     # bf16 packs 2 rows per sublane
    Bp = _round_up(B, sub)
    tB = min(Bp, 256)
    # v7x has 2 TensorCores and only the B axis is "parallel": keep >= 2 B tiles
    # whenever the batch is big enough to split.
    if Bp // tB < 2 and Bp >= 2 * sub:
        tB = _round_up(Bp // 2, sub)
    Bp = _round_up(Bp, tB)

    # Only x is padded per call (weights were prepared once).
    xp = jnp.zeros((Bp, Dp), cd).at[:B, :D].set(x.astype(cd))

    grid = (Bp // tB, Cp // tC)
    n_btiles = grid[0]
    isz = jnp.dtype(cd).itemsize

    # Actual work with the FC hoisted out of the C loop.
    flops = 2 * Bp * (Dp * Hp + Hp * Ep) + 2 * Bp * Ep * Cp
    transcendentals = Bp * Hp + Bp * Cp          # sigmoid + sqrt
    bytes_accessed = (isz * (Bp * Dp + Dp * Hp + Hp * Ep) + 4 * (Hp + Ep)
                      + n_btiles * (isz * Ep * Cp + 4 * Cp)   # table re-streamed per B tile
                      + 4 * Bp * Cp)                          # output writeback

    # Explicit VMEM budget (resident weights + double-buffered streams + scratch)
    # with headroom: v5e's 16 MiB / v7x's 32 MiB scoped defaults are too small.
    vmem_needed = (2 * isz * (Dp * Hp + Hp * Ep) + 2 * 4 * (Hp + Ep)
                   + 2 * (isz * tB * Dp + isz * Ep * tC + 4 * tC + 4 * tB * tC)
                   + isz * tB * Ep + 4 * tB * 128)
    vmem_limit = int(min(max(1.5 * vmem_needed + (4 << 20), 32 << 20), 96 << 20))

    scratch = [pltpu.VMEM((tB, Ep), cd),          # cached h (compute dtype)
               pltpu.VMEM((tB, 1), jnp.float32)]  # cached ||h||^2

    def invoke(single_buffer_weights):
        # Constant-index_map weights never change block -> single-buffer them
        # (halves their VMEM footprint; important for v7x's 64 MiB VMEM).
        wkw = dict(pipeline_mode=pl.Buffered(1)) if single_buffer_weights else {}
        in_specs = [
            pl.BlockSpec((tB, Dp), lambda i, j: (i, 0)),          # x: tiled over B
            pl.BlockSpec((Dp, Hp), lambda i, j: (0, 0), **wkw),   # w1: VMEM-resident
            pl.BlockSpec((1, Hp), lambda i, j: (0, 0), **wkw),    # b1
            pl.BlockSpec((Hp, Ep), lambda i, j: (0, 0), **wkw),   # w2
            pl.BlockSpec((1, Ep), lambda i, j: (0, 0), **wkw),    # b2
            pl.BlockSpec((Ep, tC), lambda i, j: (0, j)),          # -2*g^T: tiled over C
            pl.BlockSpec((1, tC), lambda i, j: (0, j)),           # ||g||^2
            pl.BlockSpec((1, 1), lambda i, j: (0, 0),
                         memory_space=pltpu.SMEM),                # alpha (scalar path)
        ]
        return pl.pallas_call(
            ctoy_kernel,
            out_shape=jax.ShapeDtypeStruct((Bp, Cp), jnp.float32),
            grid=grid,
            in_specs=in_specs,
            out_specs=pl.BlockSpec((tB, tC), lambda i, j: (i, j)),
            scratch_shapes=scratch,
            compiler_params=pltpu.CompilerParams(
                # C is the inner "arbitrary" axis so the FC/h scratch is reused;
                # B stays "parallel" for megacore / v7x 2-TC sharding.
                dimension_semantics=("parallel", "arbitrary"),
                vmem_limit_bytes=vmem_limit),
            cost_estimate=pl.CostEstimate(
                flops=flops, transcendentals=transcendentals,
                bytes_accessed=bytes_accessed),
        )(xp, params["w1p"], params["b1p"], params["w2p"], params["b2p"],
          params["gtp"], params["gsq"], params["alpha"])

    try:
        out = invoke(True)
    except Exception:   # older jax without BlockSpec(pipeline_mode=...): double-buffer
        out = invoke(False)

    # Slice padded rows/cols off so downstream max/argmax see only real classes.
    return out[:B, :C]


def ctoy_embedding(x, w1, b1, w2, b2, emb_weight, alpha,
                   *, compute_dtype=jnp.bfloat16):
    """Convenience one-shot wrapper (prepare + forward)."""
    return ctoy_embedding_forward(
        x, ctoy_prepare(w1, b1, w2, b2, emb_weight, alpha,
                        compute_dtype=compute_dtype))


def reference_forward(x, w1, b1, w2, b2, emb_weight, alpha):
    h = jax.nn.sigmoid(x @ w1 + b1) @ w2 + b2
    diff = h[:, None, :] - emb_weight[None, :, :]
    d = alpha[0] * jnp.sqrt(jnp.sum(diff * diff, axis=-1))
    return -d


if __name__ == "__main__":
    # Small shapes consistent with the module.
    B, input_dim, hidden_dim, emb_dim, num_classes = 8, 16, 32, 32, 8

    key = jax.random.PRNGKey(0)
    k_x, k_w1, k_b1, k_w2, k_b2, k_emb = jax.random.split(key, 6)

    x = jax.random.normal(k_x, (B, input_dim), dtype=jnp.float32)

    # Deterministic synthetic parameters (shapes from __init__);
    # weights stored transposed vs. torch so the kernel does x @ W + b.
    w1 = jax.random.normal(k_w1, (input_dim, hidden_dim), dtype=jnp.float32) * 0.1
    b1 = jax.random.normal(k_b1, (hidden_dim,), dtype=jnp.float32) * 0.1
    w2 = jax.random.normal(k_w2, (hidden_dim, emb_dim), dtype=jnp.float32) * 0.1
    b2 = jax.random.normal(k_b2, (emb_dim,), dtype=jnp.float32) * 0.1
    emb_weight = jax.random.normal(k_emb, (num_classes, emb_dim), dtype=jnp.float32)
    alpha = jnp.ones((1,), dtype=jnp.float32)  # nn.Parameter(torch.ones(1))

    ref = reference_forward(x, w1, b1, w2, b2, emb_weight, alpha)

    # Exact path: f32 MXU operands (use when tiny distances must be exact).
    params_f32 = ctoy_prepare(w1, b1, w2, b2, emb_weight, alpha,
                              compute_dtype=jnp.float32)
    out_f32 = ctoy_embedding_forward(x, params_f32)
    jax.block_until_ready(out_f32)
    assert out_f32.shape == (B, num_classes)
    assert jnp.allclose(out_f32, ref, atol=1e-4, rtol=1e-4), "f32 mismatch vs reference"

    # Fast path: bf16 MXU operands, f32 accumulation (default on v5e/v6e/v7x).
    params_bf16 = ctoy_prepare(w1, b1, w2, b2, emb_weight, alpha,
                               compute_dtype=jnp.bfloat16)
    out_bf16 = ctoy_embedding_forward(x, params_bf16)
    jax.block_until_ready(out_bf16)
    assert out_bf16.shape == (B, num_classes)
    assert jnp.allclose(out_bf16, ref, atol=1e-1, rtol=5e-2), "bf16 mismatch vs reference"

    print("KERNEL_OK")
</pallas_src>

<mosaic_0001>
module attributes {stable_mosaic.version = 11 : i64} {
  func.func @ctoy_kernel(%arg0: i32, %arg1: i32, %arg2: memref<8x128xf32, #tpu.memory_space<vmem>>, %arg3: memref<128x128xf32, #tpu.memory_space<vmem>>, %arg4: memref<1x128xf32, #tpu.memory_space<vmem>>, %arg5: memref<128x128xf32, #tpu.memory_space<vmem>>, %arg6: memref<1x128xf32, #tpu.memory_space<vmem>>, %arg7: memref<128x128xf32, #tpu.memory_space<vmem>>, %arg8: memref<1x128xf32, #tpu.memory_space<vmem>>, %arg9: memref<1x1xf32, #tpu.memory_space<smem>>, %arg10: memref<8x128xf32, #tpu.memory_space<vmem>>, %arg11: memref<8x128xf32, #tpu.memory_space<vmem>>, %arg12: memref<8x1xf32, #tpu.memory_space<vmem>>) attributes {dimension_semantics = [#tpu.dimension_semantics<parallel>, #tpu.dimension_semantics<arbitrary>], iteration_bounds = array<i64: 1, 1>, scalar_prefetch = 0 : i64, scratch_operands = 2 : i64, tpu.core_type = #tpu.core_type<tc>, window_params = [{transform_indices = @transform_0, window_bounds = array<i64: 8, 128>}, {pipeline_mode = #tpu.pipeline_mode<synchronous>, transform_indices = @transform_1, window_bounds = array<i64: 128, 128>}, {pipeline_mode = #tpu.pipeline_mode<synchronous>, transform_indices = @transform_2, window_bounds = array<i64: 1, 128>}, {pipeline_mode = #tpu.pipeline_mode<synchronous>, transform_indices = @transform_3, window_bounds = array<i64: 128, 128>}, {pipeline_mode = #tpu.pipeline_mode<synchronous>, transform_indices = @transform_4, window_bounds = array<i64: 1, 128>}, {transform_indices = @transform_5, window_bounds = array<i64: 128, 128>}, {transform_indices = @transform_6, window_bounds = array<i64: 1, 128>}, {transform_indices = @transform_7, window_bounds = array<i64: 1, 1>}, {transform_indices = @transform_8, window_bounds = array<i64: 8, 128>}]} {
    %c0_i32 = arith.constant 0 : i32
    %0 = arith.cmpi eq, %arg1, %c0_i32 : i32
    %1 = arith.extui %0 : i1 to i32
    %c0_i32_0 = arith.constant 0 : i32
    %2 = arith.cmpi ne, %1, %c0_i32_0 : i32
    scf.if %2 {
      %c0_14 = arith.constant 0 : index
      %c0_15 = arith.constant 0 : index
      %20 = vector.load %arg2[%c0_14, %c0_15] : memref<8x128xf32, #tpu.memory_space<vmem>>, vector<8x128xf32>
      %c0_16 = arith.constant 0 : index
      %c0_17 = arith.constant 0 : index
      %21 = vector.load %arg3[%c0_16, %c0_17] : memref<128x128xf32, #tpu.memory_space<vmem>>, vector<128x128xf32>
      %cst_18 = arith.constant dense<0.000000e+00> : vector<8x128xf32>
      %22 = tpu.matmul %20, %21, %cst_18 {dimension_numbers = #tpu.dot_dimension_numbers<[1], [0], [0], [1], [0, 0, 1, 1], [], []>} : vector<8x128xf32>, vector<128x128xf32>, vector<8x128xf32> -> vector<8x128xf32>
      %c0_19 = arith.constant 0 : index
      %c0_20 = arith.constant 0 : index
      %23 = vector.load %arg4[%c0_19, %c0_20] : memref<1x128xf32, #tpu.memory_space<vmem>>, vector<1x128xf32>
      %24 = vector.broadcast %23 : vector<1x128xf32> to vector<8x128xf32>
      %25 = arith.addf %22, %24 : vector<8x128xf32>
      %26 = arith.negf %25 : vector<8x128xf32>
      %27 = math.exp %26 : vector<8x128xf32>
      %cst_21 = arith.constant 1.000000e+00 : f32
      %28 = vector.broadcast %cst_21 : f32 to vector<8x128xf32>
      %29 = arith.addf %28, %27 : vector<8x128xf32>
      %30 = arith.divf %28, %29 : vector<8x128xf32>
      %c0_22 = arith.constant 0 : index
      %c0_23 = arith.constant 0 : index
      %31 = vector.load %arg5[%c0_22, %c0_23] : memref<128x128xf32, #tpu.memory_space<vmem>>, vector<128x128xf32>
      %cst_24 = arith.constant dense<0.000000e+00> : vector<8x128xf32>
      %32 = tpu.matmul %30, %31, %cst_24 {dimension_numbers = #tpu.dot_dimension_numbers<[1], [0], [0], [1], [0, 0, 1, 1], [], []>} : vector<8x128xf32>, vector<128x128xf32>, vector<8x128xf32> -> vector<8x128xf32>
      %c0_25 = arith.constant 0 : index
      %c0_26 = arith.constant 0 : index
      %33 = vector.load %arg6[%c0_25, %c0_26] : memref<1x128xf32, #tpu.memory_space<vmem>>, vector<1x128xf32>
      %34 = vector.broadcast %33 : vector<1x128xf32> to vector<8x128xf32>
      %35 = arith.addf %32, %34 : vector<8x128xf32>
      %36 = arith.mulf %35, %35 : vector<8x128xf32>
      %cst_27 = arith.constant dense<0.000000e+00> : vector<8xf32>
      %37 = vector.multi_reduction <add>, %36, %cst_27 [1] : vector<8x128xf32> to vector<8xf32>
      %38 = vector.shape_cast %37 : vector<8xf32> to vector<8x1xf32>
      %c0_28 = arith.constant 0 : index
      %c0_29 = arith.constant 0 : index
      %39 = vector.load %arg12[%c0_28, %c0_29] : memref<8x1xf32, #tpu.memory_space<vmem>>, vector<8x1xf32>
      tpu.vector_store %arg12[%c0_28, %c0_29], %38 {strides = array<i32>} : memref<8x1xf32, #tpu.memory_space<vmem>>, vector<8x1xf32>,
      %c0_30 = arith.constant 0 : index
      %c0_31 = arith.constant 0 : index
      %40 = vector.load %arg11[%c0_30, %c0_31] : memref<8x128xf32, #tpu.memory_space<vmem>>, vector<8x128xf32>
      tpu.vector_store %arg11[%c0_30, %c0_31], %35 {strides = array<i32>} : memref<8x128xf32, #tpu.memory_space<vmem>>, vector<8x128xf32>,
    } else {
    }
    %c0 = arith.constant 0 : index
    %c0_1 = arith.constant 0 : index
    %3 = vector.load %arg11[%c0, %c0_1] : memref<8x128xf32, #tpu.memory_space<vmem>>, vector<8x128xf32>
    %c0_2 = arith.constant 0 : index
    %c0_3 = arith.constant 0 : index
    %4 = vector.load %arg7[%c0_2, %c0_3] : memref<128x128xf32, #tpu.memory_space<vmem>>, vector<128x128xf32>
    %cst = arith.constant dense<0.000000e+00> : vector<8x128xf32>
    %5 = tpu.matmul %3, %4, %cst {dimension_numbers = #tpu.dot_dimension_numbers<[1], [0], [0], [1], [0, 0, 1, 1], [], []>} : vector<8x128xf32>, vector<128x128xf32>, vector<8x128xf32> -> vector<8x128xf32>
    %c0_4 = arith.constant 0 : index
    %c0_5 = arith.constant 0 : index
    %6 = vector.load %arg12[%c0_4, %c0_5] : memref<8x1xf32, #tpu.memory_space<vmem>>, vector<8x1xf32>
    %c0_6 = arith.constant 0 : index
    %c0_7 = arith.constant 0 : index
    %7 = vector.load %arg8[%c0_6, %c0_7] : memref<1x128xf32, #tpu.memory_space<vmem>>, vector<1x128xf32>
    %8 = vector.broadcast %6 : vector<8x1xf32> to vector<8x128xf32>
    %9 = vector.broadcast %7 : vector<1x128xf32> to vector<8x128xf32>
    %10 = arith.addf %8, %9 : vector<8x128xf32>
    %11 = arith.addf %10, %5 : vector<8x128xf32>
    %cst_8 = arith.constant 0.000000e+00 : f32
    %12 = vector.broadcast %cst_8 : f32 to vector<8x128xf32>
    %13 = arith.maximumf %11, %12 : vector<8x128xf32>
    %c0_9 = arith.constant 0 : index
    %c0_10 = arith.constant 0 : index
    %14 = memref.load %arg9[%c0_9, %c0_10] : memref<1x1xf32, #tpu.memory_space<smem>>
    %cst_11 = arith.constant 0.000000e+00 : f32
    %15 = arith.subf %cst_11, %14 : f32
    %16 = math.sqrt %13 : vector<8x128xf32>
    %17 = vector.broadcast %15 : f32 to vector<8x128xf32>
    %18 = arith.mulf %17, %16 : vector<8x128xf32>
    %c0_12 = arith.constant 0 : index
    %c0_13 = arith.constant 0 : index
    %19 = vector.load %arg10[%c0_12, %c0_13] : memref<8x128xf32, #tpu.memory_space<vmem>>, vector<8x128xf32>
    tpu.vector_store %arg10[%c0_12, %c0_13], %18 {strides = array<i32>} : memref<8x128xf32, #tpu.memory_space<vmem>>, vector<8x128xf32>,
    return
  }
  func.func @transform_0(%arg0: i32, %arg1: i32) -> (i32, i32) {
    %c0_i32 = arith.constant 0 : i32
    %c0_i32_0 = arith.constant 0 : i32
    return %arg0, %c0_i32 : i32, i32
  }
  func.func @transform_1(%arg0: i32, %arg1: i32) -> (i32, i32) {
    %c0_i32 = arith.constant 0 : i32
    %c0_i32_0 = arith.constant 0 : i32
    %c0_i32_1 = arith.constant 0 : i32
    return %c0_i32, %c0_i32_0 : i32, i32
  }
  func.func @transform_2(%arg0: i32, %arg1: i32) -> (i32, i32) {
    %c0_i32 = arith.constant 0 : i32
    %c0_i32_0 = arith.constant 0 : i32
    %c0_i32_1 = arith.constant 0 : i32
    return %c0_i32, %c0_i32_0 : i32, i32
  }
  func.func @transform_3(%arg0: i32, %arg1: i32) -> (i32, i32) {
    %c0_i32 = arith.constant 0 : i32
    %c0_i32_0 = arith.constant 0 : i32
    %c0_i32_1 = arith.constant 0 : i32
    return %c0_i32, %c0_i32_0 : i32, i32
  }
  func.func @transform_4(%arg0: i32, %arg1: i32) -> (i32, i32) {
    %c0_i32 = arith.constant 0 : i32
    %c0_i32_0 = arith.constant 0 : i32
    %c0_i32_1 = arith.constant 0 : i32
    return %c0_i32, %c0_i32_0 : i32, i32
  }
  func.func @transform_5(%arg0: i32, %arg1: i32) -> (i32, i32) {
    %c0_i32 = arith.constant 0 : i32
    %c0_i32_0 = arith.constant 0 : i32
    return %c0_i32, %arg1 : i32, i32
  }
  func.func @transform_6(%arg0: i32, %arg1: i32) -> (i32, i32) {
    %c0_i32 = arith.constant 0 : i32
    %c0_i32_0 = arith.constant 0 : i32
    return %c0_i32, %arg1 : i32, i32
  }
  func.func @transform_7(%arg0: i32, %arg1: i32) -> (i32, i32) {
    %c0_i32 = arith.constant 0 : i32
    %c0_i32_0 = arith.constant 0 : i32
    %c0_i32_1 = arith.constant 0 : i32
    return %c0_i32, %c0_i32_0 : i32, i32
  }
  func.func @transform_8(%arg0: i32, %arg1: i32) -> (i32, i32) {
    %c0_i32 = arith.constant 0 : i32
    return %arg0, %arg1 : i32, i32
  }
}

module attributes {stable_mosaic.version = 11 : i64} {
  func.func @ctoy_kernel(%arg0: i32, %arg1: i32, %arg2: memref<8x128xf32, #tpu.memory_space<vmem>>, %arg3: memref<128x128xf32, #tpu.memory_space<vmem>>, %arg4: memref<1x128xf32, #tpu.memory_space<vmem>>, %arg5: memref<128x128xf32, #tpu.memory_space<vmem>>, %arg6: memref<1x128xf32, #tpu.memory_space<vmem>>, %arg7: memref<128x128xf32, #tpu.memory_space<vmem>>, %arg8: memref<1x128xf32, #tpu.memory_space<vmem>>, %arg9: memref<1x1xf32, #tpu.memory_space<smem>>, %arg10: memref<8x128xf32, #tpu.memory_space<vmem>>, %arg11: memref<8x128xf32, #tpu.memory_space<vmem>>, %arg12: memref<8x1xf32, #tpu.memory_space<vmem>>) attributes {dimension_semantics = [#tpu.dimension_semantics<parallel>, #tpu.dimension_semantics<arbitrary>], iteration_bounds = array<i64: 1, 1>, scalar_prefetch = 0 : i64, scratch_operands = 2 : i64, tpu.core_type = #tpu.core_type<tc>, window_params = [{transform_indices = @transform_0, window_bounds = array<i64: 8, 128>}, {pipeline_mode = #tpu.pipeline_mode<synchronous>, transform_indices = @transform_1, window_bounds = array<i64: 128, 128>}, {pipeline_mode = #tpu.pipeline_mode<synchronous>, transform_indices = @transform_2, window_bounds = array<i64: 1, 128>}, {pipeline_mode = #tpu.pipeline_mode<synchronous>, transform_indices = @transform_3, window_bounds = array<i64: 128, 128>}, {pipeline_mode = #tpu.pipeline_mode<synchronous>, transform_indices = @transform_4, window_bounds = array<i64: 1, 128>}, {transform_indices = @transform_5, window_bounds = array<i64: 128, 128>}, {transform_indices = @transform_6, window_bounds = array<i64: 1, 128>}, {transform_indices = @transform_7, window_bounds = array<i64: 1, 1>}, {transform_indices = @transform_8, window_bounds = array<i64: 8, 128>}]} {
    %c0_i32 = arith.constant 0 : i32
    %0 = arith.cmpi eq, %arg1, %c0_i32 : i32
    %1 = arith.extui %0 : i1 to i32
    %c0_i32_0 = arith.constant 0 : i32
    %2 = arith.cmpi ne, %1, %c0_i32_0 : i32
    scf.if %2 {
      %c0_14 = arith.constant 0 : index
      %c0_15 = arith.constant 0 : index
      %20 = vector.load %arg2[%c0_14, %c0_15] : memref<8x128xf32, #tpu.memory_space<vmem>>, vector<8x128xf32>
      %c0_16 = arith.constant 0 : index
      %c0_17 = arith.constant 0 : index
      %21 = vector.load %arg3[%c0_16, %c0_17] : memref<128x128xf32, #tpu.memory_space<vmem>>, vector<128x128xf32>
      %cst_18 = arith.constant dense<0.000000e+00> : vector<8x128xf32>
      %22 = tpu.matmul %20, %21, %cst_18 {dimension_numbers = #tpu.dot_dimension_numbers<[1], [0], [0], [1], [0, 0, 1, 1], [], []>} : vector<8x128xf32>, vector<128x128xf32>, vector<8x128xf32> -> vector<8x128xf32>
      %c0_19 = arith.constant 0 : index
      %c0_20 = arith.constant 0 : index
      %23 = vector.load %arg4[%c0_19, %c0_20] : memref<1x128xf32, #tpu.memory_space<vmem>>, vector<1x128xf32>
      %24 = vector.broadcast %23 : vector<1x128xf32> to vector<8x128xf32>
      %25 = arith.addf %22, %24 : vector<8x128xf32>
      %26 = arith.negf %25 : vector<8x128xf32>
      %27 = math.exp %26 : vector<8x128xf32>
      %cst_21 = arith.constant 1.000000e+00 : f32
      %28 = vector.broadcast %cst_21 : f32 to vector<8x128xf32>
      %29 = arith.addf %28, %27 : vector<8x128xf32>
      %30 = arith.divf %28, %29 : vector<8x128xf32>
      %c0_22 = arith.constant 0 : index
      %c0_23 = arith.constant 0 : index
      %31 = vector.load %arg5[%c0_22, %c0_23] : memref<128x128xf32, #tpu.memory_space<vmem>>, vector<128x128xf32>
      %cst_24 = arith.constant dense<0.000000e+00> : vector<8x128xf32>
      %32 = tpu.matmul %30, %31, %cst_24 {dimension_numbers = #tpu.dot_dimension_numbers<[1], [0], [0], [1], [0, 0, 1, 1], [], []>} : vector<8x128xf32>, vector<128x128xf32>, vector<8x128xf32> -> vector<8x128xf32>
      %c0_25 = arith.constant 0 : index
      %c0_26 = arith.constant 0 : index
      %33 = vector.load %arg6[%c0_25, %c0_26] : memref<1x128xf32, #tpu.memory_space<vmem>>, vector<1x128xf32>
      %34 = vector.broadcast %33 : vector<1x128xf32> to vector<8x128xf32>
      %35 = arith.addf %32, %34 : vector<8x128xf32>
      %36 = arith.mulf %35, %35 : vector<8x128xf32>
      %cst_27 = arith.constant dense<0.000000e+00> : vector<8xf32>
      %37 = vector.multi_reduction <add>, %36, %cst_27 [1] : vector<8x128xf32> to vector<8xf32>
      %38 = vector.shape_cast %37 : vector<8xf32> to vector<8x1xf32>
      %c0_28 = arith.constant 0 : index
      %c0_29 = arith.constant 0 : index
      %39 = vector.load %arg12[%c0_28, %c0_29] : memref<8x1xf32, #tpu.memory_space<vmem>>, vector<8x1xf32>
      tpu.vector_store %arg12[%c0_28, %c0_29], %38 {strides = array<i32>} : memref<8x1xf32, #tpu.memory_space<vmem>>, vector<8x1xf32>,
      %c0_30 = arith.constant 0 : index
      %c0_31 = arith.constant 0 : index
      %40 = vector.load %arg11[%c0_30, %c0_31] : memref<8x128xf32, #tpu.memory_space<vmem>>, vector<8x128xf32>
      tpu.vector_store %arg11[%c0_30, %c0_31], %35 {strides = array<i32>} : memref<8x128xf32, #tpu.memory_space<vmem>>, vector<8x128xf32>,
    } else {
    }
    %c0 = arith.constant 0 : index
    %c0_1 = arith.constant 0 : index
    %3 = vector.load %arg11[%c0, %c0_1] : memref<8x128xf32, #tpu.memory_space<vmem>>, vector<8x128xf32>
    %c0_2 = arith.constant 0 : index
    %c0_3 = arith.constant 0 : index
    %4 = vector.load %arg7[%c0_2, %c0_3] : memref<128x128xf32, #tpu.memory_space<vmem>>, vector<128x128xf32>
    %cst = arith.constant dense<0.000000e+00> : vector<8x128xf32>
    %5 = tpu.matmul %3, %4, %cst {dimension_numbers = #tpu.dot_dimension_numbers<[1], [0], [0], [1], [0, 0, 1, 1], [], []>} : vector<8x128xf32>, vector<128x128xf32>, vector<8x128xf32> -> vector<8x128xf32>
    %c0_4 = arith.constant 0 : index
    %c0_5 = arith.constant 0 : index
    %6 = vector.load %arg12[%c0_4, %c0_5] : memref<8x1xf32, #tpu.memory_space<vmem>>, vector<8x1xf32>
    %c0_6 = arith.constant 0 : index
    %c0_7 = arith.constant 0 : index
    %7 = vector.load %arg8[%c0_6, %c0_7] : memref<1x128xf32, #tpu.memory_space<vmem>>, vector<1x128xf32>
    %8 = vector.broadcast %6 : vector<8x1xf32> to vector<8x128xf32>
    %9 = vector.broadcast %7 : vector<1x128xf32> to vector<8x128xf32>
    %10 = arith.addf %8, %9 : vector<8x128xf32>
    %11 = arith.addf %10, %5 : vector<8x128xf32>
    %cst_8 = arith.constant 0.000000e+00 : f32
    %12 = vector.broadcast %cst_8 : f32 to vector<8x128xf32>
    %13 = arith.maximumf %11, %12 : vector<8x128xf32>
    %c0_9 = arith.constant 0 : index
    %c0_10 = arith.constant 0 : index
    %14 = memref.load %arg9[%c0_9, %c0_10] : memref<1x1xf32, #tpu.memory_space<smem>>
    %cst_11 = arith.constant 0.000000e+00 : f32
    %15 = arith.subf %cst_11, %14 : f32
    %16 = math.sqrt %13 : vector<8x128xf32>
    %17 = vector.broadcast %15 : f32 to vector<8x128xf32>
    %18 = arith.mulf %17, %16 : vector<8x128xf32>
    %c0_12 = arith.constant 0 : index
    %c0_13 = arith.constant 0 : index
    %19 = vector.load %arg10[%c0_12, %c0_13] : memref<8x128xf32, #tpu.memory_space<vmem>>, vector<8x128xf32>
    tpu.vector_store %arg10[%c0_12, %c0_13], %18 {strides = array<i32>} : memref<8x128xf32, #tpu.memory_space<vmem>>, vector<8x128xf32>,
    return
  }
  func.func @transform_0(%arg0: i32, %arg1: i32) -> (i32, i32) {
    %c0_i32 = arith.constant 0 : i32
    %c0_i32_0 = arith.constant 0 : i32
    return %arg0, %c0_i32 : i32, i32
  }
  func.func @transform_1(%arg0: i32, %arg1: i32) -> (i32, i32) {
    %c0_i32 = arith.constant 0 : i32
    %c0_i32_0 = arith.constant 0 : i32
    %c0_i32_1 = arith.constant 0 : i32
    return %c0_i32, %c0_i32_0 : i32, i32
  }
  func.func @transform_2(%arg0: i32, %arg1: i32) -> (i32, i32) {
    %c0_i32 = arith.constant 0 : i32
    %c0_i32_0 = arith.constant 0 : i32
    %c0_i32_1 = arith.constant 0 : i32
    return %c0_i32, %c0_i32_0 : i32, i32
  }
  func.func @transform_3(%arg0: i32, %arg1: i32) -> (i32, i32) {
    %c0_i32 = arith.constant 0 : i32
    %c0_i32_0 = arith.constant 0 : i32
    %c0_i32_1 = arith.constant 0 : i32
    return %c0_i32, %c0_i32_0 : i32, i32
  }
  func.func @transform_4(%arg0: i32, %arg1: i32) -> (i32, i32) {
    %c0_i32 = arith.constant 0 : i32
    %c0_i32_0 = arith.constant 0 : i32
    %c0_i32_1 = arith.constant 0 : i32
    return %c0_i32, %c0_i32_0 : i32, i32
  }
  func.func @transform_5(%arg0: i32, %arg1: i32) -> (i32, i32) {
    %c0_i32 = arith.constant 0 : i32
    %c0_i32_0 = arith.constant 0 : i32
    return %c0_i32, %arg1 : i32, i32
  }
  func.func @transform_6(%arg0: i32, %arg1: i32) -> (i32, i32) {
    %c0_i32 = arith.constant 0 : i32
    %c0_i32_0 = arith.constant 0 : i32
    return %c0_i32, %arg1 : i32, i32
  }
  func.func @transform_7(%arg0: i32, %arg1: i32) -> (i32, i32) {
    %c0_i32 = arith.constant 0 : i32
    %c0_i32_0 = arith.constant 0 : i32
    %c0_i32_1 = arith.constant 0 : i32
    return %c0_i32, %c0_i32_0 : i32, i32
  }
  func.func @transform_8(%arg0: i32, %arg1: i32) -> (i32, i32) {
    %c0_i32 = arith.constant 0 : i32
    return %arg0, %arg1 : i32, i32
  }
}

</mosaic_0001>

<llo_original>
// kernel: tpu_custom_call.1
$region0: #{tpu_custom_call.1}
  #allocation0 [shape = 'u32[]', space=smem, size = 0x4, offset = 0x4, fixed_abs, tag = 'smem constant byte address 0x4 - core index']
  #allocation1 [shape = 'u32[72,128]{1,0:T(1,128)}', space=vmem, size = 0x9000, scoped, tag = 'internal scratch']
  #allocation2 [shape = 'f32[8,128]{1,0:T(8,128)}', space=vmem, size = 0x1000, scoped, tag = 'scratch operand']
  #allocation3 [shape = 'f32[8,1]{1,0:T(8,128)}', space=vmem, size = 0x1000, scoped, tag = 'scratch operand']
  #allocation4 [shape = 'f32[1,1]{1,0:T(1,128)S(6)}', space=smem, size = 0x200, scoped, tag = 'scoped memory for tpu_custom_call.1']
  %s0 = inlined_call_operand.hbm [shape: f32[8,128], index: 0, kind: input, shape index: {}]
  %s1 = inlined_call_operand.hbm [shape: f32[128,128], index: 1, kind: input, shape index: {}]
  %s2 = inlined_call_operand.vmem [shape: f32[1,128], index: 2, kind: input, shape index: {}]
  %s3 = inlined_call_operand.hbm [shape: f32[128,128], index: 3, kind: input, shape index: {}]
  %s4 = inlined_call_operand.vmem [shape: f32[1,128], index: 4, kind: input, shape index: {}]
  %s5 = inlined_call_operand.hbm [shape: f32[128,128], index: 5, kind: input, shape index: {}]
  %s6 = inlined_call_operand.vmem [shape: f32[1,128], index: 6, kind: input, shape index: {}]
  %s7 = inlined_call_operand.<no memory space> [shape: f32[1,1], index: 7, kind: input, shape index: {}]
  %s8 = inlined_call_operand.hbm [shape: f32[8,128], index: 8, kind: output, shape index: {}]
  %s9 = sld [smem:[#allocation0]]
  $region62: #{tpu_custom_call.1} parent=0
    _
  %s11 = ssub.s32 1, %s9
  %s12 = scalar_select 0, %s11, %s9
  %13 = sst [smem:[#allocation4]] %s7
  $region1: #{tpu_custom_call.1} parent=0
    #allocation5 [shape = 'u8[4096]{0}', space=vmem, size = 0x1000, scoped, tag = 'input window, operand 0, single buffered']
    #allocation6 [shape = 's32[1]{0}', space=sflag, size = 0x4, scoped, tag = 'scoped memory for tpu_custom_call.1']
    #allocation7 [shape = 's32[1]{0}', space=sflag, size = 0x4, scoped, tag = 'scoped memory for tpu_custom_call.1']
    #allocation8 [shape = 'u8[65536]{0}', space=vmem, size = 0x10000, scoped, tag = 'input window, operand 1, single buffered']
    #allocation9 [shape = 's32[1]{0}', space=sflag, size = 0x4, scoped, tag = 'scoped memory for tpu_custom_call.1']
    #allocation10 [shape = 'u8[65536]{0}', space=vmem, size = 0x10000, scoped, tag = 'input window, operand 3, single buffered']
    #allocation11 [shape = 'u8[65536]{0}', space=vmem, size = 0x10000, scoped, tag = 'input window, operand 5, single buffered']
    #allocation12 [shape = 's32[1]{0}', space=sflag, size = 0x4, scoped, tag = 'scoped memory for tpu_custom_call.1']
    #allocation13 [shape = 'u8[4096]{0}', space=vmem, size = 0x1000, scoped, tag = 'output window, operand 0, single buffered']
    %14 = vsyncpa [#allocation6], 0
    %15 = vsyncpa [#allocation9], 0
    %16 = vsyncpa [#allocation12], 0
    %17 = vsyncpa [#allocation7], 0
    // Predicated region
    $region2: #{tpu_custom_call.1} parent=1 // pred_check
      _
    $region3: #{tpu_custom_call.1} parent=1 // pred_check_branch
      %19 = sbr.rel (0) target = $region5
    $region4: #{tpu_custom_call.1} parent=1 // pred_region
      %21 = vsyncadd [#allocation6], 0
      %s23 = sshll.u32 %s0, 4
      %s24 = int_to_ptr.hbm [resolvable:$true] %s23
      %s25 = sshll.u32 [#allocation5], 4
      %s26 = int_to_ptr.vmem [resolvable:$true] %s25
      %28 = dma.hbm_to_vmem [thread:$0]  %s24, 128, %s26, [#allocation6]
    $region5: #{tpu_custom_call.1} parent=1 // pred_fallthru
      _
    // Predicated region
    $region6: #{tpu_custom_call.1} parent=1 // pred_check
      _
    $region7: #{tpu_custom_call.1} parent=1 // pred_check_branch
      %30 = sbr.rel (0) target = $region9
    $region8: #{tpu_custom_call.1} parent=1 // pred_region
      %32 = vsyncadd [#allocation9], 0
      %s33 = sshll.u32 %s1, 4
      %s34 = int_to_ptr.hbm [resolvable:$true] %s33
      %s35 = sshll.u32 [#allocation8], 4
      %s36 = int_to_ptr.vmem [resolvable:$true] %s35
      %41 = dma.hbm_to_vmem [thread:$0]  %s34, 2048, %s36, [#allocation9], 128, 128, 8
    $region9: #{tpu_custom_call.1} parent=1 // pred_fallthru
      _
    // Predicated region
    $region10: #{tpu_custom_call.1} parent=1 // pred_check
      _
    $region11: #{tpu_custom_call.1} parent=1 // pred_check_branch
      %43 = sbr.rel (0) target = $region13
    $region12: #{tpu_custom_call.1} parent=1 // pred_region
      _
    $region13: #{tpu_custom_call.1} parent=1 // pred_fallthru
      _
    // Predicated region
    $region14: #{tpu_custom_call.1} parent=1 // pred_check
      _
    $region15: #{tpu_custom_call.1} parent=1 // pred_check_branch
      %45 = sbr.rel (0) target = $region17
    $region16: #{tpu_custom_call.1} parent=1 // pred_region
      %47 = vsyncadd [#allocation9], 0
      %s48 = sshll.u32 %s3, 4
      %s49 = int_to_ptr.hbm [resolvable:$true] %s48
      %s50 = sshll.u32 [#allocation10], 4
      %s51 = int_to_ptr.vmem [resolvable:$true] %s50
      %56 = dma.hbm_to_vmem [thread:$0]  %s49, 2048, %s51, [#allocation9], 128, 128, 8
    $region17: #{tpu_custom_call.1} parent=1 // pred_fallthru
      _
    // Predicated region
    $region18: #{tpu_custom_call.1} parent=1 // pred_check
      _
    $region19: #{tpu_custom_call.1} parent=1 // pred_check_branch
      %58 = sbr.rel (0) target = $region21
    $region20: #{tpu_custom_call.1} parent=1 // pred_region
      _
    $region21: #{tpu_custom_call.1} parent=1 // pred_fallthru
      _
    // Predicated region
    $region22: #{tpu_custom_call.1} parent=1 // pred_check
      _
    $region23: #{tpu_custom_call.1} parent=1 // pred_check_branch
      %60 = sbr.rel (0) target = $region25
    $region24: #{tpu_custom_call.1} parent=1 // pred_region
      %62 = vsyncadd [#allocation12], 0
      %s63 = sshll.u32 %s5, 4
      %s64 = int_to_ptr.hbm [resolvable:$true] %s63
      %s65 = sshll.u32 [#allocation11], 4
      %s66 = int_to_ptr.vmem [resolvable:$true] %s65
      %71 = dma.hbm_to_vmem [thread:$0]  %s64, 2048, %s66, [#allocation12], 128, 128, 8
    $region25: #{tpu_custom_call.1} parent=1 // pred_fallthru
      _
    // Predicated region
    $region26: #{tpu_custom_call.1} parent=1 // pred_check
      _
    $region27: #{tpu_custom_call.1} parent=1 // pred_check_branch
      %73 = sbr.rel (0) target = $region29
    $region28: #{tpu_custom_call.1} parent=1 // pred_region
      _
    $region29: #{tpu_custom_call.1} parent=1 // pred_fallthru
      _
    // Predicated region
    $region30: #{tpu_custom_call.1} parent=1 // pred_check
      _
    $region31: #{tpu_custom_call.1} parent=1 // pred_check_branch
      %75 = sbr.rel (0) target = $region33
    $region32: #{tpu_custom_call.1} parent=1 // pred_region
      _
    $region33: #{tpu_custom_call.1} parent=1 // pred_fallthru
      _
    // Predicated region
    $region34: #{tpu_custom_call.1} parent=1 // pred_check
      _
    $region35: #{tpu_custom_call.1} parent=1 // pred_check_branch
      %77 = sbr.rel (0) target = $region37
    $region36: #{tpu_custom_call.1} parent=1 // pred_region
      %79 = dma.done [#allocation6], 128
    $region37: #{tpu_custom_call.1} parent=1 // pred_fallthru
      _
    // Predicated region
    $region38: #{tpu_custom_call.1} parent=1 // pred_check
      _
    $region39: #{tpu_custom_call.1} parent=1 // pred_check_branch
      %81 = sbr.rel (0) target = $region41
    $region40: #{tpu_custom_call.1} parent=1 // pred_region
      %83 = dma.done [#allocation9], 2048
    $region41: #{tpu_custom_call.1} parent=1 // pred_fallthru
      _
    // Predicated region
    $region42: #{tpu_custom_call.1} parent=1 // pred_check
      _
    $region43: #{tpu_custom_call.1} parent=1 // pred_check_branch
      %85 = sbr.rel (0) target = $region45
    $region44: #{tpu_custom_call.1} parent=1 // pred_region
      %87 = dma.done [#allocation9], 2048
    $region45: #{tpu_custom_call.1} parent=1 // pred_fallthru
      _
    // Predicated region
    $region46: #{tpu_custom_call.1} parent=1 // pred_check
      _
    $region47: #{tpu_custom_call.1} parent=1 // pred_check_branch
      %89 = sbr.rel (0) target = $region49
    $region48: #{tpu_custom_call.1} parent=1 // pred_region
      %91 = dma.done [#allocation12], 2048
    $region49: #{tpu_custom_call.1} parent=1 // pred_fallthru
      _
    %p92 = scmp.eq.s32.totalorder 0, 0
    // Predicated region
    $region50: #{tpu_custom_call.1} parent=1 // pred_check
      %p93 = pneg %p92
    $region51: #{tpu_custom_call.1} parent=1 // pred_check_branch
      %95 = sbr.rel (%p93) target = $region53
    $region52: #{tpu_custom_call.1} parent=1 // pred_region
      %v96 = vld [vmem:[#allocation5] sm:$0xff]
      %v97 = vld [vmem:[#allocation8] sm:$0xff]
      %v98 = vld [vmem:[#allocation8 + $0x8] sm:$0xff]
      %v99 = vld [vmem:[#allocation8 + $0x10] sm:$0xff]
      %v100 = vld [vmem:[#allocation8 + $0x18] sm:$0xff]
      %v101 = vld [vmem:[#allocation8 + $0x20] sm:$0xff]
      %v102 = vld [vmem:[#allocation8 + $0x28] sm:$0xff]
      %v103 = vld [vmem:[#allocation8 + $0x30] sm:$0xff]
      %v104 = vld [vmem:[#allocation8 + $0x38] sm:$0xff]
      %v105 = vld [vmem:[#allocation8 + $0x40] sm:$0xff]
      %v106 = vld [vmem:[#allocation8 + $0x48] sm:$0xff]
      %v107 = vld [vmem:[#allocation8 + $0x50] sm:$0xff]
      %v108 = vld [vmem:[#allocation8 + $0x58] sm:$0xff]
      %v109 = vld [vmem:[#allocation8 + $0x60] sm:$0xff]
      %v110 = vld [vmem:[#allocation8 + $0x68] sm:$0xff]
      %v111 = vld [vmem:[#allocation8 + $0x70] sm:$0xff]
      %v112 = vld [vmem:[#allocation8 + $0x78] sm:$0xff]
      %v113 = vld [vmem:[%s2] sm:$0x1]
      %v115 = vperm.slane %v113, 0
      %117 = vmatpush.msra.mxu0 %v112
      %118 = vmatpush.msra.mxu0 %v111
      %119 = vmatpush.msra.mxu0 %v110
      %120 = vmatpush.msra.mxu0 %v109
      %121 = vmatpush.msra.mxu0 %v108
      %122 = vmatpush.msra.mxu0 %v107
      %123 = vmatpush.msra.mxu0 %v106
      %124 = vmatpush.msra.mxu0 %v105
      %125 = vmatpush.msra.mxu0 %v104
      %126 = vmatpush.msra.mxu0 %v103
      %127 = vmatpush.msra.mxu0 %v102
      %128 = vmatpush.msra.mxu0 %v101
      %129 = vmatpush.msra.mxu0 %v100
      %130 = vmatpush.msra.mxu0 %v99
      %131 = vmatpush.msra.mxu0 %v98
      %132 = vmatpush.msra.mxu0 %v97
      %133 = vmatmul.f32.gmra.mxu0 %v96
      %v134 = vpop.f32.mrf.mxu0
      %v135 = vadd.f32 %v115, %v134
      %136 = vdwg.mxu0
      %v137 = vxor.u32 %v135, 2147483648
      %v138 = vmul.f32 %v137, 1.442695
      %v139 = vpow.pop %v138
      %v140 = vadd.f32 %v139, 1.0
      %v141 = vrcp.pop %v140
      %v142 = vmul.f32 %v140, %v141
      %v143 = vsub.f32 1.0, %v142
      %v144 = vmul.f32 %v141, %v143
      %v145 = vadd.f32 %v141, %v144
      %vm146 = vweird.f32 %v140
      %vm147 = vweird.f32 %v141
      %vm148 = vmor %vm146, %vm147
      %v149 = vsel %vm148, %v141, %v145
      %v150 = vand.u32 2147483647, %v140
      %vm151 = vcmp.eq.f32.partialorder %v150, 8.507059e+37
      %v152 = vand.u32 %v140, 2147483648
      %v153 = vor.u32 1.1754944e-38, %v152
      %v154 = vsel %vm151, %v153, %v149
      %v155 = vmul.f32 1.0, %v154
      %v156 = vld [vmem:[#allocation10] sm:$0xff]
      %v157 = vld [vmem:[#allocation10 + $0x8] sm:$0xff]
      %v158 = vld [vmem:[#allocation10 + $0x10] sm:$0xff]
      %v159 = vld [vmem:[#allocation10 + $0x18] sm:$0xff]
      %v160 = vld [vmem:[#allocation10 + $0x20] sm:$0xff]
      %v161 = vld [vmem:[#allocation10 + $0x28] sm:$0xff]
      %v162 = vld [vmem:[#allocation10 + $0x30] sm:$0xff]
      %v163 = vld [vmem:[#allocation10 + $0x38] sm:$0xff]
      %v164 = vld [vmem:[#allocation10 + $0x40] sm:$0xff]
      %v165 = vld [vmem:[#allocation10 + $0x48] sm:$0xff]
      %v166 = vld [vmem:[#allocation10 + $0x50] sm:$0xff]
      %v167 = vld [vmem:[#allocation10 + $0x58] sm:$0xff]
      %v168 = vld [vmem:[#allocation10 + $0x60] sm:$0xff]
      %v169 = vld [vmem:[#allocation10 + $0x68] sm:$0xff]
      %v170 = vld [vmem:[#allocation10 + $0x70] sm:$0xff]
      %v171 = vld [vmem:[#allocation10 + $0x78] sm:$0xff]
      %v172 = vld [vmem:[%s4] sm:$0x1]
      %v174 = vperm.slane %v172, 0
      %176 = vmatpush.msra.mxu0 %v171
      %177 = vmatpush.msra.mxu0 %v170
      %178 = vmatpush.msra.mxu0 %v169
      %179 = vmatpush.msra.mxu0 %v168
      %180 = vmatpush.msra.mxu0 %v167
      %181 = vmatpush.msra.mxu0 %v166
      %182 = vmatpush.msra.mxu0 %v165
      %183 = vmatpush.msra.mxu0 %v164
      %184 = vmatpush.msra.mxu0 %v163
      %185 = vmatpush.msra.mxu0 %v162
      %186 = vmatpush.msra.mxu0 %v161
      %187 = vmatpush.msra.mxu0 %v160
      %188 = vmatpush.msra.mxu0 %v159
      %189 = vmatpush.msra.mxu0 %v158
      %190 = vmatpush.msra.mxu0 %v157
      %191 = vmatpush.msra.mxu0 %v156
      %192 = vmatmul.f32.gmra.mxu0 %v155
      %v193 = vpop.f32.mrf.mxu0
      %v194 = vadd.f32 %v174, %v193
      %195 = vdwg.mxu0
      %v196 = vmul.f32 %v194, %v194
      %197 = vadd.xlane.f32.xlu0 %v196
      %v198 = vpop.xlane.xlu0 %197
      %vm199 = vcmask 7168
      %200 = vst.msk [vmem:[#allocation3] sm:$0xff] %vm199, %v198
      %201 = vst [vmem:[#allocation2] sm:$0xff] %v194
    $region53: #{tpu_custom_call.1} parent=1 // pred_fallthru
      _
    %v202 = vld [vmem:[#allocation2] sm:$0xff]
    %v203 = vld [vmem:[#allocation11] sm:$0xff]
    %v204 = vld [vmem:[#allocation11 + $0x8] sm:$0xff]
    %v205 = vld [vmem:[#allocation11 + $0x10] sm:$0xff]
    %v206 = vld [vmem:[#allocation11 + $0x18] sm:$0xff]
    %v207 = vld [vmem:[#allocation11 + $0x20] sm:$0xff]
    %v208 = vld [vmem:[#allocation11 + $0x28] sm:$0xff]
    %v209 = vld [vmem:[#allocation11 + $0x30] sm:$0xff]
    %v210 = vld [vmem:[#allocation11 + $0x38] sm:$0xff]
    %v211 = vld [vmem:[#allocation11 + $0x40] sm:$0xff]
    %v212 = vld [vmem:[#allocation11 + $0x48] sm:$0xff]
    %v213 = vld [vmem:[#allocation11 + $0x50] sm:$0xff]
    %v214 = vld [vmem:[#allocation11 + $0x58] sm:$0xff]
    %v215 = vld [vmem:[#allocation11 + $0x60] sm:$0xff]
    %v216 = vld [vmem:[#allocation11 + $0x68] sm:$0xff]
    %v217 = vld [vmem:[#allocation11 + $0x70] sm:$0xff]
    %v218 = vld [vmem:[#allocation11 + $0x78] sm:$0xff]
    %219 = vmatpush.msra.mxu0 %v218
    %220 = vmatpush.msra.mxu0 %v217
    %221 = vmatpush.msra.mxu0 %v216
    %222 = vmatpush.msra.mxu0 %v215
    %223 = vmatpush.msra.mxu0 %v214
    %224 = vmatpush.msra.mxu0 %v213
    %225 = vmatpush.msra.mxu0 %v212
    %226 = vmatpush.msra.mxu0 %v211
    %227 = vmatpush.msra.mxu0 %v210
    %228 = vmatpush.msra.mxu0 %v209
    %229 = vmatpush.msra.mxu0 %v208
    %230 = vmatpush.msra.mxu0 %v207
    %231 = vmatpush.msra.mxu0 %v206
    %232 = vmatpush.msra.mxu0 %v205
    %233 = vmatpush.msra.mxu0 %v204
    %234 = vmatpush.msra.mxu0 %v203
    %235 = vmatmul.f32.gmra.mxu0 %v202
    %v236 = vpop.f32.mrf.mxu0
    %v237 = vadd.f32 0.0, %v236
    %238 = vdwg.mxu0
    %v239 = vld [vmem:[#allocation3] sm:$0xff]
    %v240 = vld [vmem:[%s6] sm:$0x1]
    %242 = vset.pattern.permute.xlu0 0
    %243 = vperm.xlu0 %242, %v239
    %v244 = vpop.permute.xlu0 %243
    %v247 = vperm.slane %v240, 0
    %v249 = vadd.f32 %v244, %v247
    %v250 = vadd.f32 %v249, %v237
    %v251 = vmax.f32 %v250, 0.0
    %s252 = sld [smem:[#allocation4]]
    %s253 = ssub.f32 0.0, %s252
    %v254 = vrsqrt.pop %v251
    %v255 = vmul.f32 %v254, %v251
    %v256 = vmul.f32 %v255, %v254
    %v257 = vmul.f32 0.5, %v256
    %v258 = vsub.f32 1.5, %v257
    %v259 = vmul.f32 %v254, %v258
    %v260 = vmul.f32 %v251, %v259
    %vm261 = vcmp.eq.f32.partialorder %v251, inf
    %v262 = vsel %vm261, %v251, %v260
    %vm263 = vcmp.eq.f32.partialorder %v251, 0.0
    %v264 = vand.u32 %v251, 2147483648
    %v265 = vsel %vm263, %v264, %v262
    %v266 = vstv %s253
    %v267 = vmul.f32 %v266, %v265
    %268 = vst [vmem:[#allocation13] sm:$0xff] %v267
    // Predicated region
    $region54: #{tpu_custom_call.1} parent=1 // pred_check
      _
    $region55: #{tpu_custom_call.1} parent=1 // pred_check_branch
      %270 = sbr.rel (0) target = $region57
    $region56: #{tpu_custom_call.1} parent=1 // pred_region
      %272 = vsyncadd [#allocation7], 0
      %s274 = sshll.u32 [#allocation13], 4
      %s275 = int_to_ptr.vmem [resolvable:$true] %s274
      %s276 = sshll.u32 %s8, 4
      %s277 = int_to_ptr.hbm [resolvable:$true] %s276
      %279 = dma.vmem_to_hbm [thread:$0]  %s275, 128, %s277, [#allocation7]
    $region57: #{tpu_custom_call.1} parent=1 // pred_fallthru
      _
    // Predicated region
    $region58: #{tpu_custom_call.1} parent=1 // pred_check
      _
    $region59: #{tpu_custom_call.1} parent=1 // pred_check_branch
      %281 = sbr.rel (0) target = $region61
    $region60: #{tpu_custom_call.1} parent=1 // pred_region
      %283 = dma.done [#allocation7], 128
    $region61: #{tpu_custom_call.1} parent=1 // pred_fallthru
      _
    %284 = vsyncpa [#allocation6], 1
    %285 = vsyncpa [#allocation9], 1
    %286 = vsyncpa [#allocation12], 1
    %287 = vsyncpa [#allocation7], 1

// kernel: tpu_custom_call.1
$region0: #{tpu_custom_call.1}
  #allocation0 [shape = 'u32[]', space=smem, size = 0x4, offset = 0x4, fixed_abs, tag = 'smem constant byte address 0x4 - core index']
  #allocation1 [shape = 'u32[72,128]{1,0:T(1,128)}', space=vmem, size = 0x9000, scoped, tag = 'internal scratch']
  #allocation2 [shape = 'f32[8,128]{1,0:T(8,128)}', space=vmem, size = 0x1000, scoped, tag = 'scratch operand']
  #allocation3 [shape = 'f32[8,1]{1,0:T(8,128)}', space=vmem, size = 0x1000, scoped, tag = 'scratch operand']
  #allocation4 [shape = 'f32[1,1]{1,0:T(1,128)S(6)}', space=smem, size = 0x200, scoped, tag = 'scoped memory for tpu_custom_call.1']
  %s0 = inlined_call_operand.hbm [shape: f32[8,128], index: 0, kind: input, shape index: {}]
  %s1 = inlined_call_operand.hbm [shape: f32[128,128], index: 1, kind: input, shape index: {}]
  %s2 = inlined_call_operand.vmem [shape: f32[1,128], index: 2, kind: input, shape index: {}]
  %s3 = inlined_call_operand.hbm [shape: f32[128,128], index: 3, kind: input, shape index: {}]
  %s4 = inlined_call_operand.vmem [shape: f32[1,128], index: 4, kind: input, shape index: {}]
  %s5 = inlined_call_operand.hbm [shape: f32[128,128], index: 5, kind: input, shape index: {}]
  %s6 = inlined_call_operand.vmem [shape: f32[1,128], index: 6, kind: input, shape index: {}]
  %s7 = inlined_call_operand.<no memory space> [shape: f32[1,1], index: 7, kind: input, shape index: {}]
  %s8 = inlined_call_operand.hbm [shape: f32[8,128], index: 8, kind: output, shape index: {}]
  %s9 = sld [smem:[#allocation0]]
  $region62: #{tpu_custom_call.1} parent=0
    _
  %s11 = ssub.s32 1, %s9
  %s12 = scalar_select 0, %s11, %s9
  %13 = sst [smem:[#allocation4]] %s7
  $region1: #{tpu_custom_call.1} parent=0
    #allocation5 [shape = 'u8[4096]{0}', space=vmem, size = 0x1000, scoped, tag = 'input window, operand 0, single buffered']
    #allocation6 [shape = 's32[1]{0}', space=sflag, size = 0x4, scoped, tag = 'scoped memory for tpu_custom_call.1']
    #allocation7 [shape = 's32[1]{0}', space=sflag, size = 0x4, scoped, tag = 'scoped memory for tpu_custom_call.1']
    #allocation8 [shape = 'u8[65536]{0}', space=vmem, size = 0x10000, scoped, tag = 'input window, operand 1, single buffered']
    #allocation9 [shape = 's32[1]{0}', space=sflag, size = 0x4, scoped, tag = 'scoped memory for tpu_custom_call.1']
    #allocation10 [shape = 'u8[65536]{0}', space=vmem, size = 0x10000, scoped, tag = 'input window, operand 3, single buffered']
    #allocation11 [shape = 'u8[65536]{0}', space=vmem, size = 0x10000, scoped, tag = 'input window, operand 5, single buffered']
    #allocation12 [shape = 's32[1]{0}', space=sflag, size = 0x4, scoped, tag = 'scoped memory for tpu_custom_call.1']
    #allocation13 [shape = 'u8[4096]{0}', space=vmem, size = 0x1000, scoped, tag = 'output window, operand 0, single buffered']
    %14 = vsyncpa [#allocation6], 0
    %15 = vsyncpa [#allocation9], 0
    %16 = vsyncpa [#allocation12], 0
    %17 = vsyncpa [#allocation7], 0
    // Predicated region
    $region2: #{tpu_custom_call.1} parent=1 // pred_check
      _
    $region3: #{tpu_custom_call.1} parent=1 // pred_check_branch
      %19 = sbr.rel (0) target = $region5
    $region4: #{tpu_custom_call.1} parent=1 // pred_region
      %21 = vsyncadd [#allocation6], 0
      %s23 = sshll.u32 %s0, 4
      %s24 = int_to_ptr.hbm [resolvable:$true] %s23
      %s25 = sshll.u32 [#allocation5], 4
      %s26 = int_to_ptr.vmem [resolvable:$true] %s25
      %28 = dma.hbm_to_vmem [thread:$0]  %s24, 128, %s26, [#allocation6]
    $region5: #{tpu_custom_call.1} parent=1 // pred_fallthru
      _
    // Predicated region
    $region6: #{tpu_custom_call.1} parent=1 // pred_check
      _
    $region7: #{tpu_custom_call.1} parent=1 // pred_check_branch
      %30 = sbr.rel (0) target = $region9
    $region8: #{tpu_custom_call.1} parent=1 // pred_region
      %32 = vsyncadd [#allocation9], 0
      %s33 = sshll.u32 %s1, 4
      %s34 = int_to_ptr.hbm [resolvable:$true] %s33
      %s35 = sshll.u32 [#allocation8], 4
      %s36 = int_to_ptr.vmem [resolvable:$true] %s35
      %41 = dma.hbm_to_vmem [thread:$0]  %s34, 2048, %s36, [#allocation9], 128, 128, 8
    $region9: #{tpu_custom_call.1} parent=1 // pred_fallthru
      _
    // Predicated region
    $region10: #{tpu_custom_call.1} parent=1 // pred_check
      _
    $region11: #{tpu_custom_call.1} parent=1 // pred_check_branch
      %43 = sbr.rel (0) target = $region13
    $region12: #{tpu_custom_call.1} parent=1 // pred_region
      _
    $region13: #{tpu_custom_call.1} parent=1 // pred_fallthru
      _
    // Predicated region
    $region14: #{tpu_custom_call.1} parent=1 // pred_check
      _
    $region15: #{tpu_custom_call.1} parent=1 // pred_check_branch
      %45 = sbr.rel (0) target = $region17
    $region16: #{tpu_custom_call.1} parent=1 // pred_region
      %47 = vsyncadd [#allocation9], 0
      %s48 = sshll.u32 %s3, 4
      %s49 = int_to_ptr.hbm [resolvable:$true] %s48
      %s50 = sshll.u32 [#allocation10], 4
      %s51 = int_to_ptr.vmem [resolvable:$true] %s50
      %56 = dma.hbm_to_vmem [thread:$0]  %s49, 2048, %s51, [#allocation9], 128, 128, 8
    $region17: #{tpu_custom_call.1} parent=1 // pred_fallthru
      _
    // Predicated region
    $region18: #{tpu_custom_call.1} parent=1 // pred_check
      _
    $region19: #{tpu_custom_call.1} parent=1 // pred_check_branch
      %58 = sbr.rel (0) target = $region21
    $region20: #{tpu_custom_call.1} parent=1 // pred_region
      _
    $region21: #{tpu_custom_call.1} parent=1 // pred_fallthru
      _
    // Predicated region
    $region22: #{tpu_custom_call.1} parent=1 // pred_check
      _
    $region23: #{tpu_custom_call.1} parent=1 // pred_check_branch
      %60 = sbr.rel (0) target = $region25
    $region24: #{tpu_custom_call.1} parent=1 // pred_region
      %62 = vsyncadd [#allocation12], 0
      %s63 = sshll.u32 %s5, 4
      %s64 = int_to_ptr.hbm [resolvable:$true] %s63
      %s65 = sshll.u32 [#allocation11], 4
      %s66 = int_to_ptr.vmem [resolvable:$true] %s65
      %71 = dma.hbm_to_vmem [thread:$0]  %s64, 2048, %s66, [#allocation12], 128, 128, 8
    $region25: #{tpu_custom_call.1} parent=1 // pred_fallthru
      _
    // Predicated region
    $region26: #{tpu_custom_call.1} parent=1 // pred_check
      _
    $region27: #{tpu_custom_call.1} parent=1 // pred_check_branch
      %73 = sbr.rel (0) target = $region29
    $region28: #{tpu_custom_call.1} parent=1 // pred_region
      _
    $region29: #{tpu_custom_call.1} parent=1 // pred_fallthru
      _
    // Predicated region
    $region30: #{tpu_custom_call.1} parent=1 // pred_check
      _
    $region31: #{tpu_custom_call.1} parent=1 // pred_check_branch
      %75 = sbr.rel (0) target = $region33
    $region32: #{tpu_custom_call.1} parent=1 // pred_region
      _
    $region33: #{tpu_custom_call.1} parent=1 // pred_fallthru
      _
    // Predicated region
    $region34: #{tpu_custom_call.1} parent=1 // pred_check
      _
    $region35: #{tpu_custom_call.1} parent=1 // pred_check_branch
      %77 = sbr.rel (0) target = $region37
    $region36: #{tpu_custom_call.1} parent=1 // pred_region
      %79 = dma.done [#allocation6], 128
    $region37: #{tpu_custom_call.1} parent=1 // pred_fallthru
      _
    // Predicated region
    $region38: #{tpu_custom_call.1} parent=1 // pred_check
      _
    $region39: #{tpu_custom_call.1} parent=1 // pred_check_branch
      %81 = sbr.rel (0) target = $region41
    $region40: #{tpu_custom_call.1} parent=1 // pred_region
      %83 = dma.done [#allocation9], 2048
    $region41: #{tpu_custom_call.1} parent=1 // pred_fallthru
      _
    // Predicated region
    $region42: #{tpu_custom_call.1} parent=1 // pred_check
      _
    $region43: #{tpu_custom_call.1} parent=1 // pred_check_branch
      %85 = sbr.rel (0) target = $region45
    $region44: #{tpu_custom_call.1} parent=1 // pred_region
      %87 = dma.done [#allocation9], 2048
    $region45: #{tpu_custom_call.1} parent=1 // pred_fallthru
      _
    // Predicated region
    $region46: #{tpu_custom_call.1} parent=1 // pred_check
      _
    $region47: #{tpu_custom_call.1} parent=1 // pred_check_branch
      %89 = sbr.rel (0) target = $region49
    $region48: #{tpu_custom_call.1} parent=1 // pred_region
      %91 = dma.done [#allocation12], 2048
    $region49: #{tpu_custom_call.1} parent=1 // pred_fallthru
      _
    %p92 = scmp.eq.s32.totalorder 0, 0
    // Predicated region
    $region50: #{tpu_custom_call.1} parent=1 // pred_check
      %p93 = pneg %p92
    $region51: #{tpu_custom_call.1} parent=1 // pred_check_branch
      %95 = sbr.rel (%p93) target = $region53
    $region52: #{tpu_custom_call.1} parent=1 // pred_region
      %v96 = vld [vmem:[#allocation5] sm:$0xff]
      %v97 = vld [vmem:[#allocation8] sm:$0xff]
      %v98 = vld [vmem:[#allocation8 + $0x8] sm:$0xff]
      %v99 = vld [vmem:[#allocation8 + $0x10] sm:$0xff]
      %v100 = vld [vmem:[#allocation8 + $0x18] sm:$0xff]
      %v101 = vld [vmem:[#allocation8 + $0x20] sm:$0xff]
      %v102 = vld [vmem:[#allocation8 + $0x28] sm:$0xff]
      %v103 = vld [vmem:[#allocation8 + $0x30] sm:$0xff]
      %v104 = vld [vmem:[#allocation8 + $0x38] sm:$0xff]
      %v105 = vld [vmem:[#allocation8 + $0x40] sm:$0xff]
      %v106 = vld [vmem:[#allocation8 + $0x48] sm:$0xff]
      %v107 = vld [vmem:[#allocation8 + $0x50] sm:$0xff]
      %v108 = vld [vmem:[#allocation8 + $0x58] sm:$0xff]
      %v109 = vld [vmem:[#allocation8 + $0x60] sm:$0xff]
      %v110 = vld [vmem:[#allocation8 + $0x68] sm:$0xff]
      %v111 = vld [vmem:[#allocation8 + $0x70] sm:$0xff]
      %v112 = vld [vmem:[#allocation8 + $0x78] sm:$0xff]
      %v113 = vld [vmem:[%s2] sm:$0x1]
      %v115 = vperm.slane %v113, 0
      %117 = vmatpush.msra.mxu0 %v112
      %118 = vmatpush.msra.mxu0 %v111
      %119 = vmatpush.msra.mxu0 %v110
      %120 = vmatpush.msra.mxu0 %v109
      %121 = vmatpush.msra.mxu0 %v108
      %122 = vmatpush.msra.mxu0 %v107
      %123 = vmatpush.msra.mxu0 %v106
      %124 = vmatpush.msra.mxu0 %v105
      %125 = vmatpush.msra.mxu0 %v104
      %126 = vmatpush.msra.mxu0 %v103
      %127 = vmatpush.msra.mxu0 %v102
      %128 = vmatpush.msra.mxu0 %v101
      %129 = vmatpush.msra.mxu0 %v100
      %130 = vmatpush.msra.mxu0 %v99
      %131 = vmatpush.msra.mxu0 %v98
      %132 = vmatpush.msra.mxu0 %v97
      %133 = vmatmul.f32.gmra.mxu0 %v96
      %v134 = vpop.f32.mrf.mxu0
      %v135 = vadd.f32 %v115, %v134
      %136 = vdwg.mxu0
      %v137 = vxor.u32 %v135, 2147483648
      %v138 = vmul.f32 %v137, 1.442695
      %v139 = vpow.pop %v138
      %v140 = vadd.f32 %v139, 1.0
      %v141 = vrcp.pop %v140
      %v142 = vmul.f32 %v140, %v141
      %v143 = vsub.f32 1.0, %v142
      %v144 = vmul.f32 %v141, %v143
      %v145 = vadd.f32 %v141, %v144
      %vm146 = vweird.f32 %v140
      %vm147 = vweird.f32 %v141
      %vm148 = vmor %vm146, %vm147
      %v149 = vsel %vm148, %v141, %v145
      %v150 = vand.u32 2147483647, %v140
      %vm151 = vcmp.eq.f32.partialorder %v150, 8.507059e+37
      %v152 = vand.u32 %v140, 2147483648
      %v153 = vor.u32 1.1754944e-38, %v152
      %v154 = vsel %vm151, %v153, %v149
      %v155 = vmul.f32 1.0, %v154
      %v156 = vld [vmem:[#allocation10] sm:$0xff]
      %v157 = vld [vmem:[#allocation10 + $0x8] sm:$0xff]
      %v158 = vld [vmem:[#allocation10 + $0x10] sm:$0xff]
      %v159 = vld [vmem:[#allocation10 + $0x18] sm:$0xff]
      %v160 = vld [vmem:[#allocation10 + $0x20] sm:$0xff]
      %v161 = vld [vmem:[#allocation10 + $0x28] sm:$0xff]
      %v162 = vld [vmem:[#allocation10 + $0x30] sm:$0xff]
      %v163 = vld [vmem:[#allocation10 + $0x38] sm:$0xff]
      %v164 = vld [vmem:[#allocation10 + $0x40] sm:$0xff]
      %v165 = vld [vmem:[#allocation10 + $0x48] sm:$0xff]
      %v166 = vld [vmem:[#allocation10 + $0x50] sm:$0xff]
      %v167 = vld [vmem:[#allocation10 + $0x58] sm:$0xff]
      %v168 = vld [vmem:[#allocation10 + $0x60] sm:$0xff]
      %v169 = vld [vmem:[#allocation10 + $0x68] sm:$0xff]
      %v170 = vld [vmem:[#allocation10 + $0x70] sm:$0xff]
      %v171 = vld [vmem:[#allocation10 + $0x78] sm:$0xff]
      %v172 = vld [vmem:[%s4] sm:$0x1]
      %v174 = vperm.slane %v172, 0
      %176 = vmatpush.msra.mxu0 %v171
      %177 = vmatpush.msra.mxu0 %v170
      %178 = vmatpush.msra.mxu0 %v169
      %179 = vmatpush.msra.mxu0 %v168
      %180 = vmatpush.msra.mxu0 %v167
      %181 = vmatpush.msra.mxu0 %v166
      %182 = vmatpush.msra.mxu0 %v165
      %183 = vmatpush.msra.mxu0 %v164
      %184 = vmatpush.msra.mxu0 %v163
      %185 = vmatpush.msra.mxu0 %v162
      %186 = vmatpush.msra.mxu0 %v161
      %187 = vmatpush.msra.mxu0 %v160
      %188 = vmatpush.msra.mxu0 %v159
      %189 = vmatpush.msra.mxu0 %v158
      %190 = vmatpush.msra.mxu0 %v157
      %191 = vmatpush.msra.mxu0 %v156
      %192 = vmatmul.f32.gmra.mxu0 %v155
      %v193 = vpop.f32.mrf.mxu0
      %v194 = vadd.f32 %v174, %v193
      %195 = vdwg.mxu0
      %v196 = vmul.f32 %v194, %v194
      %197 = vadd.xlane.f32.xlu0 %v196
      %v198 = vpop.xlane.xlu0 %197
      %vm199 = vcmask 7168
      %200 = vst.msk [vmem:[#allocation3] sm:$0xff] %vm199, %v198
      %201 = vst [vmem:[#allocation2] sm:$0xff] %v194
    $region53: #{tpu_custom_call.1} parent=1 // pred_fallthru
      _
    %v202 = vld [vmem:[#allocation2] sm:$0xff]
    %v203 = vld [vmem:[#allocation11] sm:$0xff]
    %v204 = vld [vmem:[#allocation11 + $0x8] sm:$0xff]
    %v205 = vld [vmem:[#allocation11 + $0x10] sm:$0xff]
    %v206 = vld [vmem:[#allocation11 + $0x18] sm:$0xff]
    %v207 = vld [vmem:[#allocation11 + $0x20] sm:$0xff]
    %v208 = vld [vmem:[#allocation11 + $0x28] sm:$0xff]
    %v209 = vld [vmem:[#allocation11 + $0x30] sm:$0xff]
    %v210 = vld [vmem:[#allocation11 + $0x38] sm:$0xff]
    %v211 = vld [vmem:[#allocation11 + $0x40] sm:$0xff]
    %v212 = vld [vmem:[#allocation11 + $0x48] sm:$0xff]
    %v213 = vld [vmem:[#allocation11 + $0x50] sm:$0xff]
    %v214 = vld [vmem:[#allocation11 + $0x58] sm:$0xff]
    %v215 = vld [vmem:[#allocation11 + $0x60] sm:$0xff]
    %v216 = vld [vmem:[#allocation11 + $0x68] sm:$0xff]
    %v217 = vld [vmem:[#allocation11 + $0x70] sm:$0xff]
    %v218 = vld [vmem:[#allocation11 + $0x78] sm:$0xff]
    %219 = vmatpush.msra.mxu0 %v218
    %220 = vmatpush.msra.mxu0 %v217
    %221 = vmatpush.msra.mxu0 %v216
    %222 = vmatpush.msra.mxu0 %v215
    %223 = vmatpush.msra.mxu0 %v214
    %224 = vmatpush.msra.mxu0 %v213
    %225 = vmatpush.msra.mxu0 %v212
    %226 = vmatpush.msra.mxu0 %v211
    %227 = vmatpush.msra.mxu0 %v210
    %228 = vmatpush.msra.mxu0 %v209
    %229 = vmatpush.msra.mxu0 %v208
    %230 = vmatpush.msra.mxu0 %v207
    %231 = vmatpush.msra.mxu0 %v206
    %232 = vmatpush.msra.mxu0 %v205
    %233 = vmatpush.msra.mxu0 %v204
    %234 = vmatpush.msra.mxu0 %v203
    %235 = vmatmul.f32.gmra.mxu0 %v202
    %v236 = vpop.f32.mrf.mxu0
    %v237 = vadd.f32 0.0, %v236
    %238 = vdwg.mxu0
    %v239 = vld [vmem:[#allocation3] sm:$0xff]
    %v240 = vld [vmem:[%s6] sm:$0x1]
    %242 = vset.pattern.permute.xlu0 0
    %243 = vperm.xlu0 %242, %v239
    %v244 = vpop.permute.xlu0 %243
    %v247 = vperm.slane %v240, 0
    %v249 = vadd.f32 %v244, %v247
    %v250 = vadd.f32 %v249, %v237
    %v251 = vmax.f32 %v250, 0.0
    %s252 = sld [smem:[#allocation4]]
    %s253 = ssub.f32 0.0, %s252
    %v254 = vrsqrt.pop %v251
    %v255 = vmul.f32 %v254, %v251
    %v256 = vmul.f32 %v255, %v254
    %v257 = vmul.f32 0.5, %v256
    %v258 = vsub.f32 1.5, %v257
    %v259 = vmul.f32 %v254, %v258
    %v260 = vmul.f32 %v251, %v259
    %vm261 = vcmp.eq.f32.partialorder %v251, inf
    %v262 = vsel %vm261, %v251, %v260
    %vm263 = vcmp.eq.f32.partialorder %v251, 0.0
    %v264 = vand.u32 %v251, 2147483648
    %v265 = vsel %vm263, %v264, %v262
    %v266 = vstv %s253
    %v267 = vmul.f32 %v266, %v265
    %268 = vst [vmem:[#allocation13] sm:$0xff] %v267
    // Predicated region
    $region54: #{tpu_custom_call.1} parent=1 // pred_check
      _
    $region55: #{tpu_custom_call.1} parent=1 // pred_check_branch
      %270 = sbr.rel (0) target = $region57
    $region56: #{tpu_custom_call.1} parent=1 // pred_region
      %272 = vsyncadd [#allocation7], 0
      %s274 = sshll.u32 [#allocation13], 4
      %s275 = int_to_ptr.vmem [resolvable:$true] %s274
      %s276 = sshll.u32 %s8, 4
      %s277 = int_to_ptr.hbm [resolvable:$true] %s276
      %279 = dma.vmem_to_hbm [thread:$0]  %s275, 128, %s277, [#allocation7]
    $region57: #{tpu_custom_call.1} parent=1 // pred_fallthru
      _
    // Predicated region
    $region58: #{tpu_custom_call.1} parent=1 // pred_check
      _
    $region59: #{tpu_custom_call.1} parent=1 // pred_check_branch
      %281 = sbr.rel (0) target = $region61
    $region60: #{tpu_custom_call.1} parent=1 // pred_region
      %283 = dma.done [#allocation7], 128
    $region61: #{tpu_custom_call.1} parent=1 // pred_fallthru
      _
    %284 = vsyncpa [#allocation6], 1
    %285 = vsyncpa [#allocation9], 1
    %286 = vsyncpa [#allocation12], 1
    %287 = vsyncpa [#allocation7], 1

</llo_original>
